<compile_context>
chip_gen: v7x
topology: tpu7x:2x2x1
jax: 0.10.0
libtpu: 0.0.40
codegen_flags: <defaults>
</compile_context>

<pallas_src>
import jax
import jax.numpy as jnp
from jax.experimental import pallas as pl
from jax.experimental.pallas import tpu as pltpu


def _round_up(n, m):
    return ((n + m - 1) // m) * m


def _mlp_stem_kernel(x_ref, w1_ref, b1_ref, w2_ref, b2_ref, o_ref):
    # hidden = relu(x @ W1 + b1): MXU matmul (f32 accumulate) + f32 epilogue.
    h = jnp.dot(x_ref[...], w1_ref[...], preferred_element_type=jnp.float32)
    h = h + b1_ref[...]            # b1 is (1, hidden); broadcasts over rows
    h = jnp.maximum(h, 0.0)
    # Match the second matmul's input dtype to the weights (bf16 when the
    # bf16 path is enabled, f32 otherwise -> no-op cast).
    h = h.astype(w2_ref.dtype)
    out = jnp.dot(h, w2_ref[...], preferred_element_type=jnp.float32)
    out = out + b2_ref[...]        # b2 is (1, out_dim_padded)
    o_ref[...] = out.astype(o_ref.dtype)


def policy_stem_forward(x, w1, b1, w2, b2, *,
                        batch_tile=2048,
                        compute_dtype=jnp.bfloat16):
    """Fused forward of PolicyStem.network (Linear -> ReLU -> Linear).

    x: [batch, in_dim]; w1: [in_dim, hidden]; b1: [1, hidden];
    w2: [hidden, out_dim]; b2: [1, out_dim].

    compute_dtype: dtype for x/W1/W2 on the MXU (default bf16; pass None for
    exact f32). Accumulation is always f32; biases / ReLU / output stay f32.
    batch_tile: rows per grid step for large batches. Keep it a multiple of
    128 (v5e MXU rows); multiples of 256 also align with the v6e/v7x MXU.
    """
    batch, in_dim = x.shape
    hidden = w1.shape[1]
    out_dim = w2.shape[1]
    out_dtype = x.dtype

    if compute_dtype is not None:
        x = x.astype(compute_dtype)
        w1 = w1.astype(compute_dtype)
        w2 = w2.astype(compute_dtype)
    # Biases are added to the f32 MXU accumulator — keep them f32 so the
    # epilogue needs no extra casts (important on v5e: no bf16 VPU path).
    b1 = b1.astype(jnp.float32)
    b2 = b2.astype(jnp.float32)

    # Lane-dense output: pad W2/b2 with zero columns up to a multiple of 128
    # so the output store is an unmasked full-lane vst (the biggest measured
    # store-path lever). Padding the (small) weights is one-time; the valid
    # columns are sliced back out at the end.
    out_p = _round_up(out_dim, 128)
    if out_p != out_dim:
        w2 = jnp.pad(w2, ((0, 0), (0, out_p - out_dim)))
        b2 = jnp.pad(b2, ((0, 0), (0, out_p - out_dim)))

    if batch <= batch_tile:
        # Single VMEM-resident block, no grid: no pipeline prologue, no
        # double-buffering, no per-step overhead for small batches.
        # TODO(synk): for truly tiny shapes (e.g. 8x32) the pallas_call launch
        # boundary dominates and XLA-native dot+relu fusion is competitive.
        out = pl.pallas_call(
            _mlp_stem_kernel,
            out_shape=jax.ShapeDtypeStruct((batch, out_p), out_dtype),
            in_specs=[pl.BlockSpec(memory_space=pltpu.MemorySpace.VMEM)] * 5,
            out_specs=pl.BlockSpec(memory_space=pltpu.MemorySpace.VMEM),
        )(x, w1, b1, w2, b2)
        return out[:, :out_dim] if out_p != out_dim else out

    # ---- Batch-tiled grid path ----
    # Ensure at least 2 grid steps so "parallel" can shard across v7x's two
    # TensorCores (one extra grid step on v5e/v6e is ~0.35us — noise).
    tile = min(batch_tile, _round_up(pl.cdiv(batch, 2), 128))
    tile = max(tile, 128)
    num_tiles = pl.cdiv(batch, tile)

    # NOTE: batch need not divide evenly — Pallas handles the ragged final
    # block (tail garbage input rows are row-independent in a matmul and the
    # corresponding output rows are never written), so no jnp.pad / slice
    # round-trip through HBM is needed.
    cdt = jnp.dtype(x.dtype).itemsize
    odt = jnp.dtype(out_dtype).itemsize
    vmem_bytes = (
        2 * tile * in_dim * cdt                       # double-buffered x tiles
        + 2 * tile * out_p * odt                      # double-buffered out tiles
        + 2 * (in_dim * hidden + hidden * out_p) * cdt  # weights (<= 2 buffers)
        + 2 * (hidden + out_p) * 4                      # f32 biases
        + 2 * tile * hidden * 4                         # f32 hidden intermediate
    )
    # Generous headroom; cap at 64 MiB (v7x physical per-TC VMEM).
    vmem_limit = min(max(2 * vmem_bytes + (2 << 20), 32 << 20), 64 << 20)

    def _grid_call(single_buffer_weights):
        # Constant-index (VMEM-resident) operands don't need double buffers.
        resident_kwargs = (
            dict(pipeline_mode=pl.Buffered(1)) if single_buffer_weights else {}
        )
        in_specs = [
            pl.BlockSpec((tile, in_dim), lambda i: (i, 0)),
            pl.BlockSpec((in_dim, hidden), lambda i: (0, 0), **resident_kwargs),
            pl.BlockSpec((1, hidden), lambda i: (0, 0), **resident_kwargs),
            pl.BlockSpec((hidden, out_p), lambda i: (0, 0), **resident_kwargs),
            pl.BlockSpec((1, out_p), lambda i: (0, 0), **resident_kwargs),
        ]
        return pl.pallas_call(
            _mlp_stem_kernel,
            out_shape=jax.ShapeDtypeStruct((batch, out_p), out_dtype),
            grid=(num_tiles,),
            in_specs=in_specs,
            out_specs=pl.BlockSpec((tile, out_p), lambda i: (i, 0)),
            compiler_params=pltpu.CompilerParams(
                # Batch tiles are independent -> "parallel": v7x shards grid
                # steps across its 2 TensorCores; harmless no-op on v5e/v6e.
                dimension_semantics=("parallel",),
                vmem_limit_bytes=int(vmem_limit),
            ),
        )(x, w1, b1, w2, b2)

    try:
        out = _grid_call(True)
    except Exception:
        # pipeline_mode=pl.Buffered(1) not supported by this jax/Mosaic build;
        # fall back to the default double-buffered resident weights.
        out = _grid_call(False)

    return out[:, :out_dim] if out_p != out_dim else out


def _init_linear(key, fan_in, fan_out, dtype=jnp.float32):
    """Deterministic init mimicking torch.nn.Linear defaults (uniform +-1/sqrt(fan_in))."""
    kw, kb = jax.random.split(key)
    bound = 1.0 / float(jnp.sqrt(float(fan_in)))
    # Stored as [in, out] so the kernel uses x @ W directly.
    w = jax.random.uniform(kw, (fan_in, fan_out), dtype, -bound, bound)
    b = jax.random.uniform(kb, (1, fan_out), dtype, -bound, bound)
    return w, b


if __name__ == "__main__":
    key = jax.random.PRNGKey(0)
    k_x, k_l1, k_l2, k_xb = jax.random.split(key, 4)

    # Small shapes consistent with a policy stem MLP encoder.
    batch, in_dim, hidden, out_dim = 8, 32, 128, 32

    x = jax.random.normal(k_x, (batch, in_dim), jnp.float32)
    w1, b1 = _init_linear(k_l1, in_dim, hidden)
    w2, b2 = _init_linear(k_l2, hidden, out_dim)

    # --- Path 1: small batch, single VMEM block (no grid), exact f32 ---
    out = jax.block_until_ready(
        policy_stem_forward(x, w1, b1, w2, b2, compute_dtype=None))
    ref = jnp.maximum(x @ w1 + b1, 0.0) @ w2 + b2
    assert out.shape == (batch, out_dim)
    assert jnp.allclose(out, ref, atol=1e-5, rtol=1e-5)

    # --- Path 2: large batch -> batch-tiled grid (>=2 steps, ragged tail),
    #     default bf16 compute, lane-dense padded output store ---
    big_batch = 4100   # 3 grid steps of 2048 rows with a ragged 4-row tail
    xb = jax.random.normal(k_xb, (big_batch, in_dim), jnp.float32)
    out_b = jax.block_until_ready(policy_stem_forward(xb, w1, b1, w2, b2))
    # Reference with identical casts (bf16 inputs, f32 accumulation/epilogue).
    xb16, w116, w216 = (a.astype(jnp.bfloat16) for a in (xb, w1, w2))
    h_ref = jnp.maximum(
        jnp.dot(xb16, w116, preferred_element_type=jnp.float32) + b1, 0.0)
    ref_b = jnp.dot(h_ref.astype(jnp.bfloat16), w216,
                    preferred_element_type=jnp.float32) + b2
    assert out_b.shape == (big_batch, out_dim)
    assert jnp.allclose(out_b, ref_b, atol=5e-2, rtol=5e-2)

    # TODO(synk): freeze()/unfreeze()/save()/device/reset_latent are
    # training-time / IO utilities with no kernel-side equivalent; only
    # forward() is implemented.
    print("KERNEL_OK")
</pallas_src>

<mosaic_0001>
module attributes {stable_mosaic.version = 11 : i64} {
  func.func @_mlp_stem_kernel(%arg0: memref<8x32xf32, #tpu.memory_space<vmem>>, %arg1: memref<32x128xf32, #tpu.memory_space<vmem>>, %arg2: memref<1x128xf32, #tpu.memory_space<vmem>>, %arg3: memref<128x128xf32, #tpu.memory_space<vmem>>, %arg4: memref<1x128xf32, #tpu.memory_space<vmem>>, %arg5: memref<8x128xf32, #tpu.memory_space<vmem>>) attributes {dimension_semantics = [], scalar_prefetch = 0 : i64, scratch_operands = 0 : i64, tpu.core_type = #tpu.core_type<tc>} {
    %c0 = arith.constant 0 : index
    %c0_0 = arith.constant 0 : index
    %0 = vector.load %arg0[%c0, %c0_0] : memref<8x32xf32, #tpu.memory_space<vmem>>, vector<8x32xf32>
    %c0_1 = arith.constant 0 : index
    %c0_2 = arith.constant 0 : index
    %1 = vector.load %arg1[%c0_1, %c0_2] : memref<32x128xf32, #tpu.memory_space<vmem>>, vector<32x128xf32>
    %cst = arith.constant dense<0.000000e+00> : vector<8x128xf32>
    %2 = tpu.matmul %0, %1, %cst {dimension_numbers = #tpu.dot_dimension_numbers<[1], [0], [0], [1], [0, 0, 1, 1], [], []>} : vector<8x32xf32>, vector<32x128xf32>, vector<8x128xf32> -> vector<8x128xf32>
    %c0_3 = arith.constant 0 : index
    %c0_4 = arith.constant 0 : index
    %3 = vector.load %arg2[%c0_3, %c0_4] : memref<1x128xf32, #tpu.memory_space<vmem>>, vector<1x128xf32>
    %4 = vector.broadcast %3 : vector<1x128xf32> to vector<8x128xf32>
    %5 = arith.addf %2, %4 : vector<8x128xf32>
    %cst_5 = arith.constant 0.000000e+00 : f32
    %6 = vector.broadcast %cst_5 : f32 to vector<8x128xf32>
    %7 = arith.maximumf %5, %6 : vector<8x128xf32>
    %c0_6 = arith.constant 0 : index
    %c0_7 = arith.constant 0 : index
    %8 = vector.load %arg3[%c0_6, %c0_7] : memref<128x128xf32, #tpu.memory_space<vmem>>, vector<128x128xf32>
    %cst_8 = arith.constant dense<0.000000e+00> : vector<8x128xf32>
    %9 = tpu.matmul %7, %8, %cst_8 {dimension_numbers = #tpu.dot_dimension_numbers<[1], [0], [0], [1], [0, 0, 1, 1], [], []>} : vector<8x128xf32>, vector<128x128xf32>, vector<8x128xf32> -> vector<8x128xf32>
    %c0_9 = arith.constant 0 : index
    %c0_10 = arith.constant 0 : index
    %10 = vector.load %arg4[%c0_9, %c0_10] : memref<1x128xf32, #tpu.memory_space<vmem>>, vector<1x128xf32>
    %11 = vector.broadcast %10 : vector<1x128xf32> to vector<8x128xf32>
    %12 = arith.addf %9, %11 : vector<8x128xf32>
    %c0_11 = arith.constant 0 : index
    %c0_12 = arith.constant 0 : index
    %13 = vector.load %arg5[%c0_11, %c0_12] : memref<8x128xf32, #tpu.memory_space<vmem>>, vector<8x128xf32>
    tpu.vector_store %arg5[%c0_11, %c0_12], %12 {strides = array<i32>} : memref<8x128xf32, #tpu.memory_space<vmem>>, vector<8x128xf32>,
    return
  }
}

</mosaic_0001>

<llo_original>
// kernel: tpu_custom_call.1
$region0: #{tpu_custom_call.1}
  #allocation0 [shape = 'u32[]', space=smem, size = 0x4, offset = 0x4, fixed_abs, tag = 'smem constant byte address 0x4 - core index']
  #allocation1 [shape = 'u32[144,128]{1,0:T(1,128)}', space=vmem, size = 0x12000, scoped, tag = 'internal scratch']
  %s0 = inlined_call_operand.hbm [shape: f32[8,32], index: 0, kind: input, shape index: {}]
  %s1 = inlined_call_operand.hbm [shape: f32[32,128], index: 1, kind: input, shape index: {}]
  %s2 = inlined_call_operand.vmem [shape: f32[1,128], index: 2, kind: input, shape index: {}]
  %s3 = inlined_call_operand.hbm [shape: f32[128,128], index: 3, kind: input, shape index: {}]
  %s4 = inlined_call_operand.vmem [shape: f32[1,128], index: 4, kind: input, shape index: {}]
  %s5 = inlined_call_operand.hbm [shape: f32[8,128], index: 5, kind: output, shape index: {}]
  %s6 = sld [smem:[#allocation0]]
  $region42: #{tpu_custom_call.1} parent=0
    _
  %s8 = ssub.s32 1, %s6
  %s9 = scalar_select 0, %s8, %s6
  $region1: #{tpu_custom_call.1} parent=0
    #allocation2 [shape = 'u8[4096]{0}', space=vmem, size = 0x1000, scoped, tag = 'input window, operand 0, single buffered']
    #allocation3 [shape = 's32[1]{0}', space=sflag, size = 0x4, scoped, tag = 'scoped memory for tpu_custom_call.1']
    #allocation4 [shape = 's32[1]{0}', space=sflag, size = 0x4, scoped, tag = 'scoped memory for tpu_custom_call.1']
    #allocation5 [shape = 'u8[16384]{0}', space=vmem, size = 0x4000, scoped, tag = 'input window, operand 1, single buffered']
    #allocation6 [shape = 's32[1]{0}', space=sflag, size = 0x4, scoped, tag = 'scoped memory for tpu_custom_call.1']
    #allocation7 [shape = 'u8[65536]{0}', space=vmem, size = 0x10000, scoped, tag = 'input window, operand 3, single buffered']
    #allocation8 [shape = 'u8[4096]{0}', space=vmem, size = 0x1000, scoped, tag = 'output window, operand 0, single buffered']
    %10 = vsyncpa [#allocation3], 0
    %11 = vsyncpa [#allocation6], 0
    %12 = vsyncpa [#allocation4], 0
    // Predicated region
    $region2: #{tpu_custom_call.1} parent=1 // pred_check
      _
    $region3: #{tpu_custom_call.1} parent=1 // pred_check_branch
      %14 = sbr.rel (0) target = $region5
    $region4: #{tpu_custom_call.1} parent=1 // pred_region
      %s16 = ssub.s32 128, 128
      %17 = vsyncadd [#allocation3], %s16
      %s19 = sshll.u32 [#allocation2], 4
      %s20 = int_to_ptr.vmem [resolvable:$true] %s19
      %22 = dma.hbm_to_vmem [thread:$0]  %s0, 128, %s20, [#allocation3]
    $region5: #{tpu_custom_call.1} parent=1 // pred_fallthru
      _
    // Predicated region
    $region6: #{tpu_custom_call.1} parent=1 // pred_check
      _
    $region7: #{tpu_custom_call.1} parent=1 // pred_check_branch
      %24 = sbr.rel (0) target = $region9
    $region8: #{tpu_custom_call.1} parent=1 // pred_region
      %s26 = ssub.s32 512, 512
      %27 = vsyncadd [#allocation6], %s26
      %s28 = sshll.u32 [#allocation5], 4
      %s29 = int_to_ptr.vmem [resolvable:$true] %s28
      %34 = dma.hbm_to_vmem [thread:$0]  %s1, 512, %s29, [#allocation6], 128, 128, 8
    $region9: #{tpu_custom_call.1} parent=1 // pred_fallthru
      _
    // Predicated region
    $region10: #{tpu_custom_call.1} parent=1 // pred_check
      _
    $region11: #{tpu_custom_call.1} parent=1 // pred_check_branch
      %36 = sbr.rel (0) target = $region13
    $region12: #{tpu_custom_call.1} parent=1 // pred_region
      _
    $region13: #{tpu_custom_call.1} parent=1 // pred_fallthru
      _
    // Predicated region
    $region14: #{tpu_custom_call.1} parent=1 // pred_check
      _
    $region15: #{tpu_custom_call.1} parent=1 // pred_check_branch
      %38 = sbr.rel (0) target = $region17
    $region16: #{tpu_custom_call.1} parent=1 // pred_region
      %s40 = ssub.s32 2048, 2048
      %41 = vsyncadd [#allocation6], %s40
      %s42 = sshll.u32 [#allocation7], 4
      %s43 = int_to_ptr.vmem [resolvable:$true] %s42
      %48 = dma.hbm_to_vmem [thread:$0]  %s3, 2048, %s43, [#allocation6], 128, 128, 8
    $region17: #{tpu_custom_call.1} parent=1 // pred_fallthru
      _
    // Predicated region
    $region18: #{tpu_custom_call.1} parent=1 // pred_check
      _
    $region19: #{tpu_custom_call.1} parent=1 // pred_check_branch
      %50 = sbr.rel (0) target = $region21
    $region20: #{tpu_custom_call.1} parent=1 // pred_region
      _
    $region21: #{tpu_custom_call.1} parent=1 // pred_fallthru
      _
    // Predicated region
    $region22: #{tpu_custom_call.1} parent=1 // pred_check
      _
    $region23: #{tpu_custom_call.1} parent=1 // pred_check_branch
      %52 = sbr.rel (0) target = $region25
    $region24: #{tpu_custom_call.1} parent=1 // pred_region
      %53 = dma.done [#allocation3], 128
    $region25: #{tpu_custom_call.1} parent=1 // pred_fallthru
      _
    // Predicated region
    $region26: #{tpu_custom_call.1} parent=1 // pred_check
      _
    $region27: #{tpu_custom_call.1} parent=1 // pred_check_branch
      %55 = sbr.rel (0) target = $region29
    $region28: #{tpu_custom_call.1} parent=1 // pred_region
      %56 = dma.done [#allocation6], 512
    $region29: #{tpu_custom_call.1} parent=1 // pred_fallthru
      _
    // Predicated region
    $region30: #{tpu_custom_call.1} parent=1 // pred_check
      _
    $region31: #{tpu_custom_call.1} parent=1 // pred_check_branch
      %58 = sbr.rel (0) target = $region33
    $region32: #{tpu_custom_call.1} parent=1 // pred_region
      %59 = dma.done [#allocation6], 2048
    $region33: #{tpu_custom_call.1} parent=1 // pred_fallthru
      _
    %v60 = vld [vmem:[#allocation2] sm:$0xff]
    %v61 = vld [vmem:[#allocation5] sm:$0xff]
    %v62 = vld [vmem:[#allocation5 + $0x8] sm:$0xff]
    %v63 = vld [vmem:[#allocation5 + $0x10] sm:$0xff]
    %v64 = vld [vmem:[#allocation5 + $0x18] sm:$0xff]
    %v65 = vld [vmem:[%s2] sm:$0x1]
    %v67 = vlaneseq
    %v68 = vshrl.u32 %v67, 7
    %v69 = vsub.s32 0, %v68
    %v70 = vrot.slane %v65, %v69
    %vm72 = vcmask 261120
    %v74 = vsel %vm72, %v60, 0
    %76 = vmatprep.subr.mxu0 0.0
    %77 = vmatpush1.msra.mxu0 %v61
    %78 = vmatprep.subr.mxu0 0.0
    %79 = vmatpush1.msra.mxu0 %v62
    %80 = vmatprep.subr.mxu0 0.0
    %81 = vmatpush1.msra.mxu0 %v63
    %82 = vmatprep.subr.mxu0 0.0
    %83 = vmatpush1.msra.mxu0 %v64
    %84 = vmatprep.subr.mxu0 0.0
    %85 = vmatpush1.msra.mxu0 0.0
    %86 = vmatprep.subr.mxu0 0.0
    %87 = vmatpush1.msra.mxu0 0.0
    %88 = vmatprep.subr.mxu0 0.0
    %89 = vmatpush1.msra.mxu0 0.0
    %90 = vmatprep.subr.mxu0 0.0
    %91 = vmatpush1.msra.mxu0 0.0
    %92 = vmatprep.subr.mxu0 0.0
    %93 = vmatpush1.msra.mxu0 0.0
    %94 = vmatprep.subr.mxu0 0.0
    %95 = vmatpush1.msra.mxu0 0.0
    %96 = vmatprep.subr.mxu0 0.0
    %97 = vmatpush1.msra.mxu0 0.0
    %98 = vmatprep.subr.mxu0 0.0
    %99 = vmatpush1.msra.mxu0 0.0
    %100 = vmatprep.subr.mxu0 0.0
    %101 = vmatpush1.msra.mxu0 0.0
    %102 = vmatprep.subr.mxu0 0.0
    %103 = vmatpush1.msra.mxu0 0.0
    %104 = vmatprep.subr.mxu0 0.0
    %105 = vmatpush1.msra.mxu0 0.0
    %106 = vmatprep.subr.mxu0 0.0
    %107 = vmatpush1.msra.mxu0 0.0
    %108 = vmatprep.subr.mxu0 0.0
    %109 = vmatpush1.msra.mxu0 0.0
    %110 = vmatprep.subr.mxu0 0.0
    %111 = vmatpush1.msra.mxu0 0.0
    %112 = vmatprep.subr.mxu0 0.0
    %113 = vmatpush1.msra.mxu0 0.0
    %114 = vmatprep.subr.mxu0 0.0
    %115 = vmatpush1.msra.mxu0 0.0
    %116 = vmatprep.subr.mxu0 0.0
    %117 = vmatpush1.msra.mxu0 0.0
    %118 = vmatprep.subr.mxu0 0.0
    %119 = vmatpush1.msra.mxu0 0.0
    %120 = vmatprep.subr.mxu0 0.0
    %121 = vmatpush1.msra.mxu0 0.0
    %122 = vmatprep.subr.mxu0 0.0
    %123 = vmatpush1.msra.mxu0 0.0
    %124 = vmatprep.subr.mxu0 0.0
    %125 = vmatpush1.msra.mxu0 0.0
    %126 = vmatprep.subr.mxu0 0.0
    %127 = vmatpush1.msra.mxu0 0.0
    %128 = vmatprep.subr.mxu0 0.0
    %129 = vmatpush1.msra.mxu0 0.0
    %130 = vmatprep.subr.mxu0 0.0
    %131 = vmatpush1.msra.mxu0 0.0
    %132 = vmatprep.subr.mxu0 0.0
    %133 = vmatpush1.msra.mxu0 0.0
    %134 = vmatprep.subr.mxu0 0.0
    %135 = vmatpush1.msra.mxu0 0.0
    %136 = vmatprep.subr.mxu0 0.0
    %137 = vmatpush1.msra.mxu0 0.0
    %138 = vmatprep.subr.mxu0 0.0
    %139 = vmatpush1.msra.mxu0 0.0
    %140 = vmatprep.mubr.f32.mxu0 0.0
    %141 = vmatmul.mubr.f32.gmra.mrb[0].mxu0 %v74
    %v142 = vpop.f32.mrb[0].mxu0
    %v143 = vadd.f32 %v70, %v142
    %v144 = vpop.f32.mrb[0].mxu0
    %145 = vdwg.mxu0
    %v146 = vmax.f32 %v143, 0.0
    %v147 = vld [vmem:[#allocation7] sm:$0xff]
    %v148 = vld [vmem:[#allocation7 + $0x8] sm:$0xff]
    %v149 = vld [vmem:[#allocation7 + $0x10] sm:$0xff]
    %v150 = vld [vmem:[#allocation7 + $0x18] sm:$0xff]
    %v151 = vld [vmem:[#allocation7 + $0x20] sm:$0xff]
    %v152 = vld [vmem:[#allocation7 + $0x28] sm:$0xff]
    %v153 = vld [vmem:[#allocation7 + $0x30] sm:$0xff]
    %v154 = vld [vmem:[#allocation7 + $0x38] sm:$0xff]
    %v155 = vld [vmem:[#allocation7 + $0x40] sm:$0xff]
    %v156 = vld [vmem:[#allocation7 + $0x48] sm:$0xff]
    %v157 = vld [vmem:[#allocation7 + $0x50] sm:$0xff]
    %v158 = vld [vmem:[#allocation7 + $0x58] sm:$0xff]
    %v159 = vld [vmem:[#allocation7 + $0x60] sm:$0xff]
    %v160 = vld [vmem:[#allocation7 + $0x68] sm:$0xff]
    %v161 = vld [vmem:[#allocation7 + $0x70] sm:$0xff]
    %v162 = vld [vmem:[#allocation7 + $0x78] sm:$0xff]
    %v163 = vld [vmem:[%s4] sm:$0x1]
    %v165 = vlaneseq
    %v166 = vshrl.u32 %v165, 7
    %v167 = vsub.s32 0, %v166
    %v168 = vrot.slane %v163, %v167
    %170 = vmatprep.subr.mxu0 0.0
    %171 = vmatpush1.msra.mxu0 %v147
    %172 = vmatprep.subr.mxu0 0.0
    %173 = vmatpush1.msra.mxu0 %v148
    %174 = vmatprep.subr.mxu0 0.0
    %175 = vmatpush1.msra.mxu0 %v149
    %176 = vmatprep.subr.mxu0 0.0
    %177 = vmatpush1.msra.mxu0 %v150
    %178 = vmatprep.subr.mxu0 0.0
    %179 = vmatpush1.msra.mxu0 %v151
    %180 = vmatprep.subr.mxu0 0.0
    %181 = vmatpush1.msra.mxu0 %v152
    %182 = vmatprep.subr.mxu0 0.0
    %183 = vmatpush1.msra.mxu0 %v153
    %184 = vmatprep.subr.mxu0 0.0
    %185 = vmatpush1.msra.mxu0 %v154
    %186 = vmatprep.subr.mxu0 0.0
    %187 = vmatpush1.msra.mxu0 %v155
    %188 = vmatprep.subr.mxu0 0.0
    %189 = vmatpush1.msra.mxu0 %v156
    %190 = vmatprep.subr.mxu0 0.0
    %191 = vmatpush1.msra.mxu0 %v157
    %192 = vmatprep.subr.mxu0 0.0
    %193 = vmatpush1.msra.mxu0 %v158
    %194 = vmatprep.subr.mxu0 0.0
    %195 = vmatpush1.msra.mxu0 %v159
    %196 = vmatprep.subr.mxu0 0.0
    %197 = vmatpush1.msra.mxu0 %v160
    %198 = vmatprep.subr.mxu0 0.0
    %199 = vmatpush1.msra.mxu0 %v161
    %200 = vmatprep.subr.mxu0 0.0
    %201 = vmatpush1.msra.mxu0 %v162
    %202 = vmatprep.subr.mxu0 0.0
    %203 = vmatpush1.msra.mxu0 0.0
    %204 = vmatprep.subr.mxu0 0.0
    %205 = vmatpush1.msra.mxu0 0.0
    %206 = vmatprep.subr.mxu0 0.0
    %207 = vmatpush1.msra.mxu0 0.0
    %208 = vmatprep.subr.mxu0 0.0
    %209 = vmatpush1.msra.mxu0 0.0
    %210 = vmatprep.subr.mxu0 0.0
    %211 = vmatpush1.msra.mxu0 0.0
    %212 = vmatprep.subr.mxu0 0.0
    %213 = vmatpush1.msra.mxu0 0.0
    %214 = vmatprep.subr.mxu0 0.0
    %215 = vmatpush1.msra.mxu0 0.0
    %216 = vmatprep.subr.mxu0 0.0
    %217 = vmatpush1.msra.mxu0 0.0
    %218 = vmatprep.subr.mxu0 0.0
    %219 = vmatpush1.msra.mxu0 0.0
    %220 = vmatprep.subr.mxu0 0.0
    %221 = vmatpush1.msra.mxu0 0.0
    %222 = vmatprep.subr.mxu0 0.0
    %223 = vmatpush1.msra.mxu0 0.0
    %224 = vmatprep.subr.mxu0 0.0
    %225 = vmatpush1.msra.mxu0 0.0
    %226 = vmatprep.subr.mxu0 0.0
    %227 = vmatpush1.msra.mxu0 0.0
    %228 = vmatprep.subr.mxu0 0.0
    %229 = vmatpush1.msra.mxu0 0.0
    %230 = vmatprep.subr.mxu0 0.0
    %231 = vmatpush1.msra.mxu0 0.0
    %232 = vmatprep.subr.mxu0 0.0
    %233 = vmatpush1.msra.mxu0 0.0
    %234 = vmatprep.mubr.f32.mxu0 0.0
    %235 = vmatmul.mubr.f32.gmra.mrb[0].mxu0 %v146
    %v236 = vpop.f32.mrb[0].mxu0
    %v237 = vadd.f32 %v168, %v236
    %v238 = vpop.f32.mrb[0].mxu0
    %239 = vdwg.mxu0
    %240 = vst [vmem:[#allocation8] sm:$0xff] %v237
    // Predicated region
    $region34: #{tpu_custom_call.1} parent=1 // pred_check
      _
    $region35: #{tpu_custom_call.1} parent=1 // pred_check_branch
      %242 = sbr.rel (0) target = $region37
    $region36: #{tpu_custom_call.1} parent=1 // pred_region
      %s244 = ssub.s32 128, 128
      %245 = vsyncadd [#allocation4], %s244
      %s247 = sshll.u32 [#allocation8], 4
      %s248 = int_to_ptr.vmem [resolvable:$true] %s247
      %250 = dma.vmem_to_hbm [thread:$0]  %s248, 128, %s5, [#allocation4]
    $region37: #{tpu_custom_call.1} parent=1 // pred_fallthru
      _
    // Predicated region
    $region38: #{tpu_custom_call.1} parent=1 // pred_check
      _
    $region39: #{tpu_custom_call.1} parent=1 // pred_check_branch
      %252 = sbr.rel (0) target = $region41
    $region40: #{tpu_custom_call.1} parent=1 // pred_region
      %253 = dma.done [#allocation4], 128
    $region41: #{tpu_custom_call.1} parent=1 // pred_fallthru
      _
    %254 = vsyncpa [#allocation3], 1
    %255 = vsyncpa [#allocation6], 1
    %256 = vsyncpa [#allocation4], 1

</llo_original>
